<compile_context>
chip_gen: v6e
topology: v6e:2x2x1
jax: 0.10.0
libtpu: 0.0.40
codegen_flags: <defaults>
</compile_context>

<pallas_src>
import jax
import jax.numpy as jnp
from jax.experimental import pallas as pl
from jax.experimental.pallas import tpu as pltpu


def _copy_kernel(x_ref, o_ref):
    # Dense (th, gD) tile copy; the (p, w) swap is done by the index_maps.
    o_ref[...] = x_ref[...]


def _make_row_kernel(O, g):
    """Fallback kernel: out[t, w, p, :] = in[t, p, w, :] (unrolled)."""
    if g <= O:
        def kernel(x_ref, o_ref):
            for p in range(g):
                o_ref[:, :, p, :] = x_ref[:, p, :, :]
    else:
        def kernel(x_ref, o_ref):
            for w in range(O):
                o_ref[:, w, :, :] = x_ref[:, :, w, :]
    return kernel


def my_patch_merging(x, out_patch_num, *, block_rows=None,
                     vmem_block_budget_bytes=4 << 20):
    """Pallas TPU implementation of MyPatchMerging.forward.

    x: (B, L, D), L a perfect square; out_patch_num a perfect square whose
    sqrt divides sqrt(L).  Returns (B, out_patch_num, (L // out_patch_num)*D).
    """
    B, L, D = x.shape
    P = int(round(L ** 0.5))
    assert P * P == L, "L must be a perfect square"
    O = int(round(out_patch_num ** 0.5))
    assert O * O == out_patch_num, "out_patch_num must be a perfect square"
    assert P % O == 0, "sqrt(L) must be divisible by sqrt(out_patch_num)"
    g = P // O

    out_shape = (B, O * O, g * g * D)

    # Identity permutation -> free contiguous reshape, skip the kernel (and
    # the entire HBM read+write round trip).
    if g == 1 or O == 1:
        return x.reshape(out_shape)

    BH = B * O
    gD = g * D
    itemsize = jnp.dtype(x.dtype).itemsize
    sublane_mult = 8 * max(1, 4 // itemsize)      # 8 f32 / 16 bf16 / 32 int8

    cost = pl.CostEstimate(flops=0, transcendentals=0,
                           bytes_accessed=2 * x.size * itemsize)

    if gD % 128 == 0:
        # ---------------- dense path: permutation via the grid -------------
        xv = x.reshape(BH, g * O * gD)            # contiguous -> free
        block_bytes = gD * itemsize
        if block_rows is None:
            cap = max(1, vmem_block_budget_bytes // block_bytes)
        else:
            cap = max(1, int(block_rows))
        if cap >= BH:
            th = BH                                # full extent -> always legal
        else:
            th = max(sublane_mult, (cap // sublane_mult) * sublane_mult)
            th = min(th, BH)
        nrow = pl.cdiv(BH, th)
        vmem_limit = min(48 << 20, max(32 << 20, 6 * th * gD * itemsize))

        outv = pl.pallas_call(
            _copy_kernel,
            out_shape=jax.ShapeDtypeStruct((BH, O * g * gD), x.dtype),
            grid_spec=pltpu.PrefetchScalarGridSpec(
                num_scalar_prefetch=0,
                grid=(nrow, g, O),
                in_specs=[pl.BlockSpec((th, gD),
                                       lambda i, p, w: (i, p * O + w))],
                out_specs=pl.BlockSpec((th, gD),
                                       lambda i, p, w: (i, w * g + p)),
            ),
            compiler_params=pltpu.CompilerParams(
                dimension_semantics=("parallel", "parallel", "parallel"),
                vmem_limit_bytes=vmem_limit),
            cost_estimate=cost,
        )(xv)
        return outv.reshape(out_shape)

    # ---------------- fallback path: full-row blocks ------------------------
    xv = x.reshape(BH, g, O, gD)                  # contiguous -> free
    pad_lane = -(-gD // 128) * 128
    pad_in = g * (-(-O // sublane_mult) * sublane_mult) * pad_lane
    pad_out = O * (-(-g // sublane_mult) * sublane_mult) * pad_lane
    row_bytes = max(pad_in, pad_out) * itemsize
    if block_rows is None:
        cap = max(1, vmem_block_budget_bytes // row_bytes)
    else:
        cap = max(1, int(block_rows))
    th = min(cap, BH)
    if BH >= 2:                                    # >=2 steps so v7x uses both TCs
        th = min(th, -(-BH // 2))
    nrow = pl.cdiv(BH, th)
    vmem_limit = min(48 << 20,
                     max(32 << 20, 3 * th * (pad_in + pad_out) * itemsize))

    outv = pl.pallas_call(
        _make_row_kernel(O, g),
        out_shape=jax.ShapeDtypeStruct((BH, O, g, gD), x.dtype),
        grid_spec=pltpu.PrefetchScalarGridSpec(
            num_scalar_prefetch=0,
            grid=(nrow,),
            in_specs=[pl.BlockSpec((th, g, O, gD), lambda i: (i, 0, 0, 0))],
            out_specs=pl.BlockSpec((th, O, g, gD), lambda i: (i, 0, 0, 0)),
        ),
        compiler_params=pltpu.CompilerParams(
            dimension_semantics=("parallel",),
            vmem_limit_bytes=vmem_limit),
        cost_estimate=cost,
    )(xv)
    return outv.reshape(out_shape)


def _reference(x, out_patch_num):
    B, L, D = x.shape
    P = int(round(L ** 0.5))
    O = int(round(out_patch_num ** 0.5))
    g = P // O
    x6 = x.reshape(B, O, g, O, g, D)
    x6 = jnp.einsum('bhpwqd->bhwpqd', x6)
    return x6.reshape(B, O * O, g * g * D)


if __name__ == "__main__":
    key = jax.random.PRNGKey(0)

    # (shape, out_patch_num, forced block_rows)
    cases = [
        ((2, 16, 128), 4, None),   # P=4,O=2,g=2, gD=256  -> dense grid path
        ((8, 64, 64), 16, 8),      # P=8,O=4,g=2, gD=128  -> dense path, multi-step grid
        ((2, 64, 48), 4, None),    # P=8,O=2,g=4, gD=192  -> fallback row path (g > O)
        ((2, 16, 64), 16, None),   # P=4,O=4,g=1          -> identity short-circuit
    ]

    ok = True
    for idx, (shape, opn, br) in enumerate(cases):
        key, sub = jax.random.split(key)
        x = jax.random.normal(sub, shape, dtype=jnp.float32)
        out = my_patch_merging(x, opn, block_rows=br)
        out = jax.block_until_ready(out)
        ref = _reference(x, opn)
        B, L, D = shape
        assert out.shape == (B, opn, (L // opn) * D), (idx, out.shape)
        if not bool(jnp.array_equal(out, ref)):
            ok = False
            print(f"case {idx}: MISMATCH vs reference")

    if ok:
        print("KERNEL_OK")
</pallas_src>

<mosaic_0001>
module attributes {stable_mosaic.version = 11 : i64} {
  func.func @_copy_kernel(%arg0: i32, %arg1: i32, %arg2: i32, %arg3: memref<4x256xf32, #tpu.memory_space<vmem>>, %arg4: memref<4x256xf32, #tpu.memory_space<vmem>>) attributes {dimension_semantics = [#tpu.dimension_semantics<parallel>, #tpu.dimension_semantics<parallel>, #tpu.dimension_semantics<parallel>], iteration_bounds = array<i64: 1, 2, 2>, scalar_prefetch = 0 : i64, scratch_operands = 0 : i64, tpu.core_type = #tpu.core_type<tc>, window_params = [{transform_indices = @transform_0, window_bounds = array<i64: 4, 256>}, {transform_indices = @transform_1, window_bounds = array<i64: 4, 256>}]} {
    %c0 = arith.constant 0 : index
    %c0_0 = arith.constant 0 : index
    %0 = vector.load %arg3[%c0, %c0_0] : memref<4x256xf32, #tpu.memory_space<vmem>>, vector<4x256xf32>
    %c0_1 = arith.constant 0 : index
    %c0_2 = arith.constant 0 : index
    %1 = vector.load %arg4[%c0_1, %c0_2] : memref<4x256xf32, #tpu.memory_space<vmem>>, vector<4x256xf32>
    tpu.vector_store %arg4[%c0_1, %c0_2], %0 {strides = array<i32>} : memref<4x256xf32, #tpu.memory_space<vmem>>, vector<4x256xf32>,
    return
  }
  func.func @transform_0(%arg0: i32, %arg1: i32, %arg2: i32) -> (i32, i32) {
    %c2_i32 = arith.constant 2 : i32
    %0 = arith.muli %arg1, %c2_i32 : i32
    %1 = arith.addi %0, %arg2 : i32
    %c0_i32 = arith.constant 0 : i32
    return %arg0, %1 : i32, i32
  }
  func.func @transform_1(%arg0: i32, %arg1: i32, %arg2: i32) -> (i32, i32) {
    %c2_i32 = arith.constant 2 : i32
    %0 = arith.muli %arg2, %c2_i32 : i32
    %1 = arith.addi %0, %arg1 : i32
    %c0_i32 = arith.constant 0 : i32
    return %arg0, %1 : i32, i32
  }
}

</mosaic_0001>

<llo_original>
// kernel: tpu_custom_call.1
$region0: #{tpu_custom_call.1}
  #allocation0 [shape = 'u32[]', space=smem, size = 0x4, offset = 0x4, fixed_abs, tag = 'smem constant byte address 0x4 - core index']
  #allocation1 [shape = 'u32[144,128]{1,0:T(1,128)}', space=vmem, size = 0x12000, scoped, tag = 'internal scratch']
  %s0 = inlined_call_operand.hbm [shape: f32[4,1024], index: 0, kind: input, shape index: {}]
  %s1 = inlined_call_operand.hbm [shape: f32[4,1024], index: 1, kind: output, shape index: {}]
  %s2 = sld [smem:[#allocation0]]
  $region41: #{tpu_custom_call.1} parent=0
    _
  %s4 = ssub.s32 1, %s2
  %s5 = scalar_select 0, %s4, %s2
  $region1: #{tpu_custom_call.1} parent=0
    #allocation2 [shape = 'u8[8192]{0}', space=vmem, size = 0x2000, scoped, tag = 'input window, operand 0']
    #allocation3 [shape = 's32[2]{0}', space=sflag, size = 0x8, scoped, tag = 'scoped memory for tpu_custom_call.1']
    #allocation4 [shape = 's32[2]{0}', space=sflag, size = 0x8, scoped, tag = 'scoped memory for tpu_custom_call.1']
    #allocation5 [shape = 'u8[8192]{0}', space=vmem, size = 0x2000, scoped, tag = 'output window, operand 0']
    %6 = vsyncpa [#allocation3], 0
    %s7 = scalar_lea.sflag [#allocation3], 1
    %8 = vsyncpa %s7, 0
    %9 = vsyncpa [#allocation4], 0
    %s10 = scalar_lea.sflag [#allocation4], 1
    %11 = vsyncpa %s10, 0
    loop: start=0, step=1, limit=6
    $region2: #{tpu_custom_call.1} parent=1 // loop_pre_header
      _
    $region3: #{tpu_custom_call.1} parent=1 // loop_header
      %s13 = sphi 0, %s17
      %p14 = scmp.ge.s32.totalorder %s13, 6
      %s20 = sphi 0, %s39
      %s21 = sphi 0, %s35
      %s22 = sphi 0, %s31
      %s23 = sphi 0, %s20
      %s24 = sphi 0, %s21
      %s25 = sphi 0, %s22
      %s26 = sphi 0, %s23
      %s27 = sphi 0, %s24
      %s28 = sphi 0, %s25
      %s48 = sphi 0, %s50
      %s51 = sphi 0, %s48
      %s52 = sphi 0, %s51
      %s68 = sphi 0, %s52
      %s80 = sphi 0, %s82
      %s83 = sphi 0, %s80
      %s84 = sphi 0, %s83
      %s100 = sphi 0, %s84
    $region4: #{tpu_custom_call.1} parent=1 // loop_header_branch
      %16 = sbr.rel (%p14) target = $region8
    $region5: #{tpu_custom_call.1} parent=1 // loop_body
      %s18 = ssub.s32 %s13, 1
      %s19 = ssub.s32 %s13, 2
      %s29 = sadd.s32 1, %s22
      %p30 = scmp.ge.s32.totalorder %s29, 2
      %s31 = scalar_select %p30, 0, %s29
      %s32 = sadd.s32 1, %s21
      %s33 = scalar_select %p30, %s32, %s21
      %p34 = scmp.ge.s32.totalorder %s33, 2
      %s35 = scalar_select %p34, 0, %s33
      %s36 = sadd.s32 1, %s20
      %s37 = scalar_select %p34, %s36, %s20
      %p38 = scmp.ge.s32.totalorder %s37, 1
      %s39 = scalar_select %p38, 0, %s37
      %s40 = smul.u32 %s21, 2
      %s41 = sadd.s32 %s40, %s22
      %s42 = smul.u32 %s35, 2
      %s43 = sadd.s32 %s42, %s31
      %s44 = ssub.s32 %s20, %s39
      %s45 = ssub.s32 %s41, %s43
      %s46 = sor.u32 %s44, %s45
      %p47 = scmp.eq.s32.totalorder %s46, 0
      %s49 = sadd.s32 %s48, 1
      %s50 = scalar_select %p47, %s48, %s49
      %p53 = pneg %p47
      %p54 = scmp.eq.s32.totalorder %s13, 3
      %p55 = por %p53, %p54
      %p56 = scmp.ne.s32.totalorder %s48, %s51
      %p57 = scmp.eq.s32.totalorder %s13, 0
      %p58 = por %p56, %p57
      %p59 = scmp.ne.s32.totalorder %s48, %s51
      %p60 = scmp.eq.s32.totalorder %s18, 3
      %p61 = por %p59, %p60
      %p62 = scmp.ne.s32.totalorder %s51, %s52
      %p63 = scmp.eq.s32.totalorder %s18, 0
      %p64 = por %p62, %p63
      %p65 = scmp.ne.s32.totalorder %s51, %s52
      %p66 = scmp.eq.s32.totalorder %s19, 3
      %p67 = por %p65, %p66
      %p69 = scmp.ne.s32.totalorder %s52, %s68
      %p70 = scmp.eq.s32.totalorder %s19, 0
      %p71 = por %p69, %p70
      %s72 = smul.u32 %s22, 2
      %s73 = sadd.s32 %s72, %s21
      %s74 = smul.u32 %s31, 2
      %s75 = sadd.s32 %s74, %s35
      %s76 = ssub.s32 %s20, %s39
      %s77 = ssub.s32 %s73, %s75
      %s78 = sor.u32 %s76, %s77
      %p79 = scmp.eq.s32.totalorder %s78, 0
      %s81 = sadd.s32 %s80, 1
      %s82 = scalar_select %p79, %s80, %s81
      %p85 = pneg %p79
      %p86 = scmp.eq.s32.totalorder %s13, 3
      %p87 = por %p85, %p86
      %p88 = scmp.ne.s32.totalorder %s80, %s83
      %p89 = scmp.eq.s32.totalorder %s13, 0
      %p90 = por %p88, %p89
      %p91 = scmp.ne.s32.totalorder %s80, %s83
      %p92 = scmp.eq.s32.totalorder %s18, 3
      %p93 = por %p91, %p92
      %p94 = scmp.ne.s32.totalorder %s83, %s84
      %p95 = scmp.eq.s32.totalorder %s18, 0
      %p96 = por %p94, %p95
      %p97 = scmp.ne.s32.totalorder %s83, %s84
      %p98 = scmp.eq.s32.totalorder %s19, 3
      %p99 = por %p97, %p98
      %p101 = scmp.ne.s32.totalorder %s84, %s100
      %p102 = scmp.eq.s32.totalorder %s19, 0
      %p103 = por %p101, %p102
      %p104 = scmp.le.s32.totalorder 1, %s13
      %p105 = scmp.lt.s32.totalorder %s13, 5
      %p106 = pnand %p104, %p105
      %p107 = pneg %p106
      // Predicated region
      $region9: #{tpu_custom_call.1} parent=5 // pred_check
        _
      $region10: #{tpu_custom_call.1} parent=5 // pred_check_branch
        %109 = sbr.rel (%p106) target = $region12
      $region11: #{tpu_custom_call.1} parent=5 // pred_region
        %s110 = ssub.s32 %s13, 1
      $region12: #{tpu_custom_call.1} parent=5 // pred_fallthru
        _
      %p111 = scmp.lt.s32.totalorder %s13, 4
      // Predicated region
      $region13: #{tpu_custom_call.1} parent=5 // pred_check
        %p112 = pneg %p111
      $region14: #{tpu_custom_call.1} parent=5 // pred_check_branch
        %114 = sbr.rel (%p112) target = $region16
      $region15: #{tpu_custom_call.1} parent=5 // pred_region
        // Predicated region
        $region17: #{tpu_custom_call.1} parent=15 // pred_check
          %p115 = pneg %p58
        $region18: #{tpu_custom_call.1} parent=15 // pred_check_branch
          %117 = sbr.rel (%p115) target = $region20
        $region19: #{tpu_custom_call.1} parent=15 // pred_region
          %s118 = sand.u32 %s48, 1
          %s119 = scalar_lea.sflag [#allocation3], %s118
          %s120 = sand.u32 %s48, 1
          %s121 = smul.addr %s120, 8
          %s122 = scalar_lea.vmem [#allocation2], %s121
          %s123 = smul.u32 %s21, 2
          %s124 = sadd.s32 %s123, %s22
          %s125 = smul.u32 2, %s124
          %s127 = ssub.s32 128, 128
          %128 = vsyncadd %s119, %s127
          %s129 = smul.addr %s20, 8
          %s130 = sadd.s32 %s125, %s129
          %s131 = smul.addr %s130, 64
          %s132 = scalar_lea.hbm %s0, %s131
          %s134 = sshll.u32 %s122, 4
          %s135 = int_to_ptr.vmem [resolvable:$true] %s134
          %137 = dma.hbm_to_vmem [thread:$0]  %s132, 128, %s135, %s119
        $region20: #{tpu_custom_call.1} parent=15 // pred_fallthru
          _
      $region16: #{tpu_custom_call.1} parent=5 // pred_fallthru
        _
      %p138 = scmp.le.s32.totalorder 1, %s13
      %p139 = scmp.lt.s32.totalorder %s13, 5
      %p140 = pnand %p138, %p139
      %p141 = pneg %p140
      // Predicated region
      $region21: #{tpu_custom_call.1} parent=5 // pred_check
        _
      $region22: #{tpu_custom_call.1} parent=5 // pred_check_branch
        %143 = sbr.rel (%p140) target = $region24
      $region23: #{tpu_custom_call.1} parent=5 // pred_region
        %s144 = ssub.s32 %s13, 1
        %s145 = sand.u32 %s51, 1
        %s146 = scalar_lea.sflag [#allocation3], %s145
        %s147 = sand.u32 %s51, 1
        %s148 = smul.addr %s147, 8
        %s149 = scalar_lea.vmem [#allocation2], %s148
        // Predicated region
        $region25: #{tpu_custom_call.1} parent=23 // pred_check
          %p150 = pneg %p64
        $region26: #{tpu_custom_call.1} parent=23 // pred_check_branch
          %152 = sbr.rel (%p150) target = $region28
        $region27: #{tpu_custom_call.1} parent=23 // pred_region
          %153 = dma.done %s146, 128
        $region28: #{tpu_custom_call.1} parent=23 // pred_fallthru
          _
        %s154 = sand.u32 %s51, 1
        %s155 = scalar_lea.sflag [#allocation3], %s154
        %s156 = sand.u32 %s51, 1
        %s157 = smul.addr %s156, 8
        %s158 = scalar_lea.vmem [#allocation2], %s157
        %p159 = pneg %p64
        %p160 = pneg %p61
        %p161 = pneg %p96
        %p162 = pneg %p93
        %s163 = sand.u32 %s83, 1
        %s164 = scalar_lea.sflag [#allocation4], %s163
        %s165 = sand.u32 %s83, 1
        %s166 = smul.addr %s165, 8
        %s167 = scalar_lea.vmem [#allocation5], %s166
        %s168 = smul.u32 %s24, 2
        %s169 = sadd.s32 %s168, %s25
        %s170 = smul.u32 2, %s169
        %s171 = smul.u32 %s25, 2
        %s172 = sadd.s32 %s171, %s24
        %s173 = smul.u32 2, %s172
        %v174 = vld [vmem:[%s149] sm:$0xff]
        %175 = vst [vmem:[%s167] sm:$0xff] %v174
        %s176 = sand.u32 %s83, 1
        %s177 = scalar_lea.sflag [#allocation4], %s176
        %s178 = sand.u32 %s83, 1
        %s179 = smul.addr %s178, 8
        %s180 = scalar_lea.vmem [#allocation5], %s179
        // Predicated region
        $region29: #{tpu_custom_call.1} parent=23 // pred_check
          %p181 = pneg %p93
        $region30: #{tpu_custom_call.1} parent=23 // pred_check_branch
          %183 = sbr.rel (%p181) target = $region32
        $region31: #{tpu_custom_call.1} parent=23 // pred_region
          %s184 = smul.u32 %s25, 2
          %s185 = sadd.s32 %s184, %s24
          %s186 = smul.u32 2, %s185
          %s188 = ssub.s32 128, 128
          %189 = vsyncadd %s177, %s188
          %s190 = smul.addr %s23, 8
          %s191 = sadd.s32 %s186, %s190
          %s192 = smul.addr %s191, 64
          %s193 = scalar_lea.hbm %s1, %s192
          %s195 = sshll.u32 %s180, 4
          %s196 = int_to_ptr.vmem [resolvable:$true] %s195
          %198 = dma.vmem_to_hbm [thread:$0]  %s196, 128, %s193, %s177
        $region32: #{tpu_custom_call.1} parent=23 // pred_fallthru
          _
      $region24: #{tpu_custom_call.1} parent=5 // pred_fallthru
        _
      %p199 = scmp.le.s32.totalorder 2, %s13
      // Predicated region
      $region33: #{tpu_custom_call.1} parent=5 // pred_check
        %p200 = pneg %p199
      $region34: #{tpu_custom_call.1} parent=5 // pred_check_branch
        %202 = sbr.rel (%p200) target = $region36
      $region35: #{tpu_custom_call.1} parent=5 // pred_region
        %s203 = ssub.s32 %s13, 2
        // Predicated region
        $region37: #{tpu_custom_call.1} parent=35 // pred_check
          %p204 = pneg %p99
        $region38: #{tpu_custom_call.1} parent=35 // pred_check_branch
          %206 = sbr.rel (%p204) target = $region40
        $region39: #{tpu_custom_call.1} parent=35 // pred_region
          %s207 = sand.u32 %s84, 1
          %s208 = scalar_lea.sflag [#allocation4], %s207
          %s209 = sand.u32 %s84, 1
          %s210 = smul.addr %s209, 8
          %s211 = scalar_lea.vmem [#allocation5], %s210
          %212 = dma.done %s208, 128
        $region40: #{tpu_custom_call.1} parent=35 // pred_fallthru
          _
      $region36: #{tpu_custom_call.1} parent=5 // pred_fallthru
        _
    $region6: #{tpu_custom_call.1} parent=1 // loop_footer
      %s17 = sadd.s32 1, %s13
    $region7: #{tpu_custom_call.1} parent=1 // loop_footer_branch
      %12 = sbr.rel target = $region3
    $region8: #{tpu_custom_call.1} parent=1 // loop_exit
      _
    %213 = vsyncpa [#allocation3], 1
    %s214 = scalar_lea.sflag [#allocation3], 1
    %215 = vsyncpa %s214, 1
    %216 = vsyncpa [#allocation4], 1
    %s217 = scalar_lea.sflag [#allocation4], 1
    %218 = vsyncpa %s217, 1

</llo_original>
